<compile_context>
chip_gen: v5e
topology: v5e:2x2
jax: 0.10.0
libtpu: 0.0.40
codegen_flags: <defaults>
</compile_context>

<pallas_src>
import jax
import jax.numpy as jnp
import numpy as np
from jax.experimental import pallas as pl
from jax.experimental.pallas import tpu as pltpu


# ----------------------------------------------------------------------------
# Fused Pallas kernel: both R-GCN layers in one invocation, all operands in VMEM.
#   a_ref  : (R*N, N)  flat "vertical" row-normalized adjacency
#   x_ref  : (N, F)    node features
#   w1_ref : (R, F, E) layer-1 relation weights
#   b1_ref : (1, E)
#   w2_ref : (R, E, C) layer-2 relation weights (native class width)
#   b2_ref : (1, C)
#   o_ref  : (N, C)
# ----------------------------------------------------------------------------
def _rgcn_fused_kernel(a_ref, x_ref, w1_ref, b1_ref, w2_ref, b2_ref, o_ref):
    num_rels = w1_ref.shape[0]
    n = x_ref.shape[0]

    a = a_ref[...]                                         # (R*N, N)
    x = x_ref[...]                                         # (N, F)

    # ---- layer 1:  h = relu( sum_r A_r @ X @ W1_r + b1 ) -------------------
    # One M = R*N matmul for the graph propagation, then accumulate the small
    # per-relation feature transforms into a single (N, E) f32 value.
    ax = jnp.dot(a, x, preferred_element_type=jnp.float32)         # (R*N, F)
    h = jnp.dot(ax[0:n, :], w1_ref[0], preferred_element_type=jnp.float32)
    for r in range(1, num_rels):
        h = h + jnp.dot(ax[r * n:(r + 1) * n, :], w1_ref[r],
                        preferred_element_type=jnp.float32)        # (N, E)
    h = jnp.maximum(h + b1_ref[...], 0.0)

    # ---- layer 2:  out = sum_r A_r @ h @ W2_r + b2 --------------------------
    ah = jnp.dot(a, h, preferred_element_type=jnp.float32)         # (R*N, E)
    out = jnp.dot(ah[0:n, :], w2_ref[0], preferred_element_type=jnp.float32)
    for r in range(1, num_rels):
        out = out + jnp.dot(ah[r * n:(r + 1) * n, :], w2_ref[r],
                            preferred_element_type=jnp.float32)    # (N, C)

    o_ref[...] = (out + b2_ref[...]).astype(o_ref.dtype)


@jax.jit
def rgcn_forward(A_flat, X, W1, b1_2d, W2, b2_2d):
    """A_flat: (R*N, N), X: (N, F), W1: (R, F, E), b1_2d: (1, E),
    W2: (R, E, C), b2_2d: (1, C).  All preprocessing is done once, host-side;
    this jitted function contains nothing but the fused pallas_call."""
    RN, N = A_flat.shape
    R, F, E = W1.shape
    C = W2.shape[2]

    flops = 2 * (RN * N * F + R * N * F * E          # layer 1
                 + RN * N * E + R * N * E * C)       # layer 2
    bytes_accessed = 4 * (A_flat.size + X.size + W1.size + b1_2d.size
                          + W2.size + b2_2d.size + N * C)

    return pl.pallas_call(
        _rgcn_fused_kernel,
        out_shape=jax.ShapeDtypeStruct((N, C), jnp.float32),
        in_specs=[pl.BlockSpec(memory_space=pltpu.MemorySpace.VMEM)] * 6,
        out_specs=pl.BlockSpec(memory_space=pltpu.MemorySpace.VMEM),
        cost_estimate=pl.CostEstimate(
            flops=flops, transcendentals=0, bytes_accessed=bytes_accessed),
    )(A_flat, X, W1, b1_2d, W2, b2_2d)


# ----------------------------------------------------------------------------
# Graph / parameter construction (host-side glue, plain numpy / JAX).
# Done ONCE; the resulting arrays are passed straight to the jitted forward.
# ----------------------------------------------------------------------------
def enrich(edges, n, num_base_rels):
    """Add inverse relations and a self-loop relation (as in the PyTorch code)."""
    out = list(edges)
    out += [(o, p + num_base_rels, s) for (s, p, o) in edges]          # inverses
    out += [(i, 2 * num_base_rels, i) for i in range(n)]               # self loops
    return out


def build_vertical_adj_flat(edges, n, num_rels):
    """Dense row-normalized vertical adjacency in flat layout: shape (R*N, N)."""
    A = np.zeros((num_rels * n, n), dtype=np.float32)
    for (s, p, o) in edges:
        A[p * n + s, o] += 1.0
    rowsum = A.sum(axis=1, keepdims=True)
    rowsum = np.where(rowsum == 0.0, 1.0, rowsum)
    return A / rowsum                                # same as vals / sum_sparse(...)


def xavier_uniform(key, shape, gain):
    # PyTorch fan computation for >2D tensors.
    recep = int(np.prod(shape[2:])) if len(shape) > 2 else 1
    fan_in = shape[1] * recep
    fan_out = shape[0] * recep
    bound = gain * np.sqrt(6.0 / (fan_in + fan_out))
    return jax.random.uniform(key, shape, jnp.float32, -bound, bound)


if __name__ == "__main__":
    # Small, deterministic problem.
    n = 32            # nodes
    feat_size = 16
    embed_size = 32
    num_classes = 8
    base_rels = 3
    num_rels = 2 * base_rels + 1   # inverses + self-loop relation
    # num_bases=None path (full per-relation weights); the basis-decomposition
    # branch is a trivial wrapper-side einsum over the same kernel.

    # Deterministic synthetic edge list (s, p, o).
    edges = [(i, p, (i * (p + 2) + 1) % n) for p in range(base_rels) for i in range(n)]
    edges = enrich(edges, n, base_rels)

    # ---- one-time static preprocessing (outside the per-call path) ----------
    A_flat = jnp.asarray(build_vertical_adj_flat(edges, n, num_rels))   # (R*N, N)

    key = jax.random.PRNGKey(0)
    k_feat, k_w1, k_w2 = jax.random.split(key, 3)
    gain = np.sqrt(2.0)  # calculate_gain('relu')
    features = jax.random.normal(k_feat, (n, feat_size), jnp.float32)
    W1 = xavier_uniform(k_w1, (num_rels, feat_size, embed_size), gain)
    W2 = xavier_uniform(k_w2, (num_rels, embed_size, num_classes), gain)
    b1_2d = jnp.zeros((1, embed_size), jnp.float32)
    b2_2d = jnp.zeros((1, num_classes), jnp.float32)

    # ---- run the fused kernel ------------------------------------------------
    out = rgcn_forward(A_flat, features, W1, b1_2d, W2, b2_2d)
    out = jax.block_until_ready(out)

    # Pure-JAX reference check of the exact forward semantics.
    A_ver = A_flat.reshape(num_rels, n, n)
    h_ref = jnp.einsum("rnm,mf->rnf", A_ver, features)
    h_ref = jnp.einsum("rnf,rfe->ne", h_ref, W1)
    h_ref = jax.nn.relu(h_ref + b1_2d[0])
    h_ref2 = jnp.einsum("rnm,me->rne", A_ver, h_ref)
    ref = jnp.einsum("rec,rne->nc", W2, h_ref2) + b2_2d[0]
    np.testing.assert_allclose(np.asarray(out), np.asarray(ref), rtol=1e-4, atol=1e-4)

    print("KERNEL_OK")
</pallas_src>

<mosaic_0001>
module attributes {stable_mosaic.version = 11 : i64} {
  func.func @_rgcn_fused_kernel(%arg0: memref<224x32xf32, #tpu.memory_space<vmem>>, %arg1: memref<32x16xf32, #tpu.memory_space<vmem>>, %arg2: memref<7x16x32xf32, #tpu.memory_space<vmem>>, %arg3: memref<1x32xf32, #tpu.memory_space<vmem>>, %arg4: memref<7x32x8xf32, #tpu.memory_space<vmem>>, %arg5: memref<1x8xf32, #tpu.memory_space<vmem>>, %arg6: memref<32x8xf32, #tpu.memory_space<vmem>>) attributes {dimension_semantics = [], scalar_prefetch = 0 : i64, scratch_operands = 0 : i64, tpu.core_type = #tpu.core_type<tc>} {
    %c0 = arith.constant 0 : index
    %c0_0 = arith.constant 0 : index
    %0 = vector.load %arg0[%c0, %c0_0] : memref<224x32xf32, #tpu.memory_space<vmem>>, vector<224x32xf32>
    %c0_1 = arith.constant 0 : index
    %c0_2 = arith.constant 0 : index
    %1 = vector.load %arg1[%c0_1, %c0_2] : memref<32x16xf32, #tpu.memory_space<vmem>>, vector<32x16xf32>
    %cst = arith.constant dense<0.000000e+00> : vector<224x16xf32>
    %2 = tpu.matmul %0, %1, %cst {dimension_numbers = #tpu.dot_dimension_numbers<[1], [0], [0], [1], [0, 0, 1, 1], [], []>} : vector<224x32xf32>, vector<32x16xf32>, vector<224x16xf32> -> vector<224x16xf32>
    %3 = vector.extract_strided_slice %2 {offsets = [0, 0], sizes = [32, 16], strides = [1, 1]} : vector<224x16xf32> to vector<32x16xf32>
    %c0_3 = arith.constant 0 : index
    %c0_4 = arith.constant 0 : index
    %c0_5 = arith.constant 0 : index
    %4 = vector.load %arg2[%c0_3, %c0_4, %c0_5] : memref<7x16x32xf32, #tpu.memory_space<vmem>>, vector<1x16x32xf32>
    %5 = vector.shape_cast %4 : vector<1x16x32xf32> to vector<16x32xf32>
    %cst_6 = arith.constant dense<0.000000e+00> : vector<32x32xf32>
    %6 = tpu.matmul %3, %5, %cst_6 {dimension_numbers = #tpu.dot_dimension_numbers<[1], [0], [0], [1], [0, 0, 1, 1], [], []>} : vector<32x16xf32>, vector<16x32xf32>, vector<32x32xf32> -> vector<32x32xf32>
    %7 = vector.extract_strided_slice %2 {offsets = [32, 0], sizes = [32, 16], strides = [1, 1]} : vector<224x16xf32> to vector<32x16xf32>
    %c1 = arith.constant 1 : index
    %c0_7 = arith.constant 0 : index
    %c0_8 = arith.constant 0 : index
    %8 = vector.load %arg2[%c1, %c0_7, %c0_8] : memref<7x16x32xf32, #tpu.memory_space<vmem>>, vector<1x16x32xf32>
    %9 = vector.shape_cast %8 : vector<1x16x32xf32> to vector<16x32xf32>
    %cst_9 = arith.constant dense<0.000000e+00> : vector<32x32xf32>
    %10 = tpu.matmul %7, %9, %cst_9 {dimension_numbers = #tpu.dot_dimension_numbers<[1], [0], [0], [1], [0, 0, 1, 1], [], []>} : vector<32x16xf32>, vector<16x32xf32>, vector<32x32xf32> -> vector<32x32xf32>
    %11 = arith.addf %6, %10 : vector<32x32xf32>
    %12 = vector.extract_strided_slice %2 {offsets = [64, 0], sizes = [32, 16], strides = [1, 1]} : vector<224x16xf32> to vector<32x16xf32>
    %c2 = arith.constant 2 : index
    %c0_10 = arith.constant 0 : index
    %c0_11 = arith.constant 0 : index
    %13 = vector.load %arg2[%c2, %c0_10, %c0_11] : memref<7x16x32xf32, #tpu.memory_space<vmem>>, vector<1x16x32xf32>
    %14 = vector.shape_cast %13 : vector<1x16x32xf32> to vector<16x32xf32>
    %cst_12 = arith.constant dense<0.000000e+00> : vector<32x32xf32>
    %15 = tpu.matmul %12, %14, %cst_12 {dimension_numbers = #tpu.dot_dimension_numbers<[1], [0], [0], [1], [0, 0, 1, 1], [], []>} : vector<32x16xf32>, vector<16x32xf32>, vector<32x32xf32> -> vector<32x32xf32>
    %16 = arith.addf %11, %15 : vector<32x32xf32>
    %17 = vector.extract_strided_slice %2 {offsets = [96, 0], sizes = [32, 16], strides = [1, 1]} : vector<224x16xf32> to vector<32x16xf32>
    %c3 = arith.constant 3 : index
    %c0_13 = arith.constant 0 : index
    %c0_14 = arith.constant 0 : index
    %18 = vector.load %arg2[%c3, %c0_13, %c0_14] : memref<7x16x32xf32, #tpu.memory_space<vmem>>, vector<1x16x32xf32>
    %19 = vector.shape_cast %18 : vector<1x16x32xf32> to vector<16x32xf32>
    %cst_15 = arith.constant dense<0.000000e+00> : vector<32x32xf32>
    %20 = tpu.matmul %17, %19, %cst_15 {dimension_numbers = #tpu.dot_dimension_numbers<[1], [0], [0], [1], [0, 0, 1, 1], [], []>} : vector<32x16xf32>, vector<16x32xf32>, vector<32x32xf32> -> vector<32x32xf32>
    %21 = arith.addf %16, %20 : vector<32x32xf32>
    %22 = vector.extract_strided_slice %2 {offsets = [128, 0], sizes = [32, 16], strides = [1, 1]} : vector<224x16xf32> to vector<32x16xf32>
    %c4 = arith.constant 4 : index
    %c0_16 = arith.constant 0 : index
    %c0_17 = arith.constant 0 : index
    %23 = vector.load %arg2[%c4, %c0_16, %c0_17] : memref<7x16x32xf32, #tpu.memory_space<vmem>>, vector<1x16x32xf32>
    %24 = vector.shape_cast %23 : vector<1x16x32xf32> to vector<16x32xf32>
    %cst_18 = arith.constant dense<0.000000e+00> : vector<32x32xf32>
    %25 = tpu.matmul %22, %24, %cst_18 {dimension_numbers = #tpu.dot_dimension_numbers<[1], [0], [0], [1], [0, 0, 1, 1], [], []>} : vector<32x16xf32>, vector<16x32xf32>, vector<32x32xf32> -> vector<32x32xf32>
    %26 = arith.addf %21, %25 : vector<32x32xf32>
    %27 = vector.extract_strided_slice %2 {offsets = [160, 0], sizes = [32, 16], strides = [1, 1]} : vector<224x16xf32> to vector<32x16xf32>
    %c5 = arith.constant 5 : index
    %c0_19 = arith.constant 0 : index
    %c0_20 = arith.constant 0 : index
    %28 = vector.load %arg2[%c5, %c0_19, %c0_20] : memref<7x16x32xf32, #tpu.memory_space<vmem>>, vector<1x16x32xf32>
    %29 = vector.shape_cast %28 : vector<1x16x32xf32> to vector<16x32xf32>
    %cst_21 = arith.constant dense<0.000000e+00> : vector<32x32xf32>
    %30 = tpu.matmul %27, %29, %cst_21 {dimension_numbers = #tpu.dot_dimension_numbers<[1], [0], [0], [1], [0, 0, 1, 1], [], []>} : vector<32x16xf32>, vector<16x32xf32>, vector<32x32xf32> -> vector<32x32xf32>
    %31 = arith.addf %26, %30 : vector<32x32xf32>
    %32 = vector.extract_strided_slice %2 {offsets = [192, 0], sizes = [32, 16], strides = [1, 1]} : vector<224x16xf32> to vector<32x16xf32>
    %c6 = arith.constant 6 : index
    %c0_22 = arith.constant 0 : index
    %c0_23 = arith.constant 0 : index
    %33 = vector.load %arg2[%c6, %c0_22, %c0_23] : memref<7x16x32xf32, #tpu.memory_space<vmem>>, vector<1x16x32xf32>
    %34 = vector.shape_cast %33 : vector<1x16x32xf32> to vector<16x32xf32>
    %cst_24 = arith.constant dense<0.000000e+00> : vector<32x32xf32>
    %35 = tpu.matmul %32, %34, %cst_24 {dimension_numbers = #tpu.dot_dimension_numbers<[1], [0], [0], [1], [0, 0, 1, 1], [], []>} : vector<32x16xf32>, vector<16x32xf32>, vector<32x32xf32> -> vector<32x32xf32>
    %36 = arith.addf %31, %35 : vector<32x32xf32>
    %c0_25 = arith.constant 0 : index
    %c0_26 = arith.constant 0 : index
    %37 = vector.load %arg3[%c0_25, %c0_26] : memref<1x32xf32, #tpu.memory_space<vmem>>, vector<1x32xf32>
    %38 = vector.broadcast %37 : vector<1x32xf32> to vector<32x32xf32>
    %39 = arith.addf %36, %38 : vector<32x32xf32>
    %cst_27 = arith.constant 0.000000e+00 : f32
    %40 = vector.broadcast %cst_27 : f32 to vector<32x32xf32>
    %41 = arith.maximumf %39, %40 : vector<32x32xf32>
    %cst_28 = arith.constant dense<0.000000e+00> : vector<224x32xf32>
    %42 = tpu.matmul %0, %41, %cst_28 {dimension_numbers = #tpu.dot_dimension_numbers<[1], [0], [0], [1], [0, 0, 1, 1], [], []>} : vector<224x32xf32>, vector<32x32xf32>, vector<224x32xf32> -> vector<224x32xf32>
    %43 = vector.extract_strided_slice %42 {offsets = [0, 0], sizes = [32, 32], strides = [1, 1]} : vector<224x32xf32> to vector<32x32xf32>
    %c0_29 = arith.constant 0 : index
    %c0_30 = arith.constant 0 : index
    %c0_31 = arith.constant 0 : index
    %44 = vector.load %arg4[%c0_29, %c0_30, %c0_31] : memref<7x32x8xf32, #tpu.memory_space<vmem>>, vector<1x32x8xf32>
    %45 = vector.shape_cast %44 : vector<1x32x8xf32> to vector<32x8xf32>
    %cst_32 = arith.constant dense<0.000000e+00> : vector<32x8xf32>
    %46 = tpu.matmul %43, %45, %cst_32 {dimension_numbers = #tpu.dot_dimension_numbers<[1], [0], [0], [1], [0, 0, 1, 1], [], []>} : vector<32x32xf32>, vector<32x8xf32>, vector<32x8xf32> -> vector<32x8xf32>
    %47 = vector.extract_strided_slice %42 {offsets = [32, 0], sizes = [32, 32], strides = [1, 1]} : vector<224x32xf32> to vector<32x32xf32>
    %c1_33 = arith.constant 1 : index
    %c0_34 = arith.constant 0 : index
    %c0_35 = arith.constant 0 : index
    %48 = vector.load %arg4[%c1_33, %c0_34, %c0_35] : memref<7x32x8xf32, #tpu.memory_space<vmem>>, vector<1x32x8xf32>
    %49 = vector.shape_cast %48 : vector<1x32x8xf32> to vector<32x8xf32>
    %cst_36 = arith.constant dense<0.000000e+00> : vector<32x8xf32>
    %50 = tpu.matmul %47, %49, %cst_36 {dimension_numbers = #tpu.dot_dimension_numbers<[1], [0], [0], [1], [0, 0, 1, 1], [], []>} : vector<32x32xf32>, vector<32x8xf32>, vector<32x8xf32> -> vector<32x8xf32>
    %51 = arith.addf %46, %50 : vector<32x8xf32>
    %52 = vector.extract_strided_slice %42 {offsets = [64, 0], sizes = [32, 32], strides = [1, 1]} : vector<224x32xf32> to vector<32x32xf32>
    %c2_37 = arith.constant 2 : index
    %c0_38 = arith.constant 0 : index
    %c0_39 = arith.constant 0 : index
    %53 = vector.load %arg4[%c2_37, %c0_38, %c0_39] : memref<7x32x8xf32, #tpu.memory_space<vmem>>, vector<1x32x8xf32>
    %54 = vector.shape_cast %53 : vector<1x32x8xf32> to vector<32x8xf32>
    %cst_40 = arith.constant dense<0.000000e+00> : vector<32x8xf32>
    %55 = tpu.matmul %52, %54, %cst_40 {dimension_numbers = #tpu.dot_dimension_numbers<[1], [0], [0], [1], [0, 0, 1, 1], [], []>} : vector<32x32xf32>, vector<32x8xf32>, vector<32x8xf32> -> vector<32x8xf32>
    %56 = arith.addf %51, %55 : vector<32x8xf32>
    %57 = vector.extract_strided_slice %42 {offsets = [96, 0], sizes = [32, 32], strides = [1, 1]} : vector<224x32xf32> to vector<32x32xf32>
    %c3_41 = arith.constant 3 : index
    %c0_42 = arith.constant 0 : index
    %c0_43 = arith.constant 0 : index
    %58 = vector.load %arg4[%c3_41, %c0_42, %c0_43] : memref<7x32x8xf32, #tpu.memory_space<vmem>>, vector<1x32x8xf32>
    %59 = vector.shape_cast %58 : vector<1x32x8xf32> to vector<32x8xf32>
    %cst_44 = arith.constant dense<0.000000e+00> : vector<32x8xf32>
    %60 = tpu.matmul %57, %59, %cst_44 {dimension_numbers = #tpu.dot_dimension_numbers<[1], [0], [0], [1], [0, 0, 1, 1], [], []>} : vector<32x32xf32>, vector<32x8xf32>, vector<32x8xf32> -> vector<32x8xf32>
    %61 = arith.addf %56, %60 : vector<32x8xf32>
    %62 = vector.extract_strided_slice %42 {offsets = [128, 0], sizes = [32, 32], strides = [1, 1]} : vector<224x32xf32> to vector<32x32xf32>
    %c4_45 = arith.constant 4 : index
    %c0_46 = arith.constant 0 : index
    %c0_47 = arith.constant 0 : index
    %63 = vector.load %arg4[%c4_45, %c0_46, %c0_47] : memref<7x32x8xf32, #tpu.memory_space<vmem>>, vector<1x32x8xf32>
    %64 = vector.shape_cast %63 : vector<1x32x8xf32> to vector<32x8xf32>
    %cst_48 = arith.constant dense<0.000000e+00> : vector<32x8xf32>
    %65 = tpu.matmul %62, %64, %cst_48 {dimension_numbers = #tpu.dot_dimension_numbers<[1], [0], [0], [1], [0, 0, 1, 1], [], []>} : vector<32x32xf32>, vector<32x8xf32>, vector<32x8xf32> -> vector<32x8xf32>
    %66 = arith.addf %61, %65 : vector<32x8xf32>
    %67 = vector.extract_strided_slice %42 {offsets = [160, 0], sizes = [32, 32], strides = [1, 1]} : vector<224x32xf32> to vector<32x32xf32>
    %c5_49 = arith.constant 5 : index
    %c0_50 = arith.constant 0 : index
    %c0_51 = arith.constant 0 : index
    %68 = vector.load %arg4[%c5_49, %c0_50, %c0_51] : memref<7x32x8xf32, #tpu.memory_space<vmem>>, vector<1x32x8xf32>
    %69 = vector.shape_cast %68 : vector<1x32x8xf32> to vector<32x8xf32>
    %cst_52 = arith.constant dense<0.000000e+00> : vector<32x8xf32>
    %70 = tpu.matmul %67, %69, %cst_52 {dimension_numbers = #tpu.dot_dimension_numbers<[1], [0], [0], [1], [0, 0, 1, 1], [], []>} : vector<32x32xf32>, vector<32x8xf32>, vector<32x8xf32> -> vector<32x8xf32>
    %71 = arith.addf %66, %70 : vector<32x8xf32>
    %72 = vector.extract_strided_slice %42 {offsets = [192, 0], sizes = [32, 32], strides = [1, 1]} : vector<224x32xf32> to vector<32x32xf32>
    %c6_53 = arith.constant 6 : index
    %c0_54 = arith.constant 0 : index
    %c0_55 = arith.constant 0 : index
    %73 = vector.load %arg4[%c6_53, %c0_54, %c0_55] : memref<7x32x8xf32, #tpu.memory_space<vmem>>, vector<1x32x8xf32>
    %74 = vector.shape_cast %73 : vector<1x32x8xf32> to vector<32x8xf32>
    %cst_56 = arith.constant dense<0.000000e+00> : vector<32x8xf32>
    %75 = tpu.matmul %72, %74, %cst_56 {dimension_numbers = #tpu.dot_dimension_numbers<[1], [0], [0], [1], [0, 0, 1, 1], [], []>} : vector<32x32xf32>, vector<32x8xf32>, vector<32x8xf32> -> vector<32x8xf32>
    %76 = arith.addf %71, %75 : vector<32x8xf32>
    %c0_57 = arith.constant 0 : index
    %c0_58 = arith.constant 0 : index
    %77 = vector.load %arg5[%c0_57, %c0_58] : memref<1x8xf32, #tpu.memory_space<vmem>>, vector<1x8xf32>
    %78 = vector.broadcast %77 : vector<1x8xf32> to vector<32x8xf32>
    %79 = arith.addf %76, %78 : vector<32x8xf32>
    %c0_59 = arith.constant 0 : index
    %c0_60 = arith.constant 0 : index
    %80 = vector.load %arg6[%c0_59, %c0_60] : memref<32x8xf32, #tpu.memory_space<vmem>>, vector<32x8xf32>
    tpu.vector_store %arg6[%c0_59, %c0_60], %79 {strides = array<i32>} : memref<32x8xf32, #tpu.memory_space<vmem>>, vector<32x8xf32>,
    return
  }
}

</mosaic_0001>

<llo_original>
// kernel: rgcn_forward.1
$region0: #{rgcn_forward.1}
  #allocation0 [shape = 'u32[]', space=smem, size = 0x4, offset = 0x4, fixed_abs, tag = 'smem constant byte address 0x4 - core index']
  #allocation1 [shape = 'u32[72,128]{1,0:T(1,128)}', space=vmem, size = 0x9000, scoped, tag = 'internal scratch']
  %s0 = inlined_call_operand.vmem [shape: f32[224,32], index: 0, kind: input, shape index: {}]
  %s1 = inlined_call_operand.vmem [shape: f32[32,16], index: 1, kind: input, shape index: {}]
  %s2 = inlined_call_operand.vmem [shape: f32[7,16,32], index: 2, kind: input, shape index: {}]
  %s3 = inlined_call_operand.vmem [shape: f32[1,32], index: 3, kind: input, shape index: {}]
  %s4 = inlined_call_operand.vmem [shape: f32[7,32,8], index: 4, kind: input, shape index: {}]
  %s5 = inlined_call_operand.vmem [shape: f32[1,8], index: 5, kind: input, shape index: {}]
  %s6 = inlined_call_operand.vmem [shape: f32[32,8], index: 6, kind: output, shape index: {}]
  %s7 = sld [smem:[#allocation0]]
  $region34: #{rgcn_forward.1} parent=0
    _
  %s9 = ssub.s32 1, %s7
  %s10 = scalar_select 0, %s9, %s7
  // Predicated region
  $region2: #{rgcn_forward.1} parent=0 // pred_check
    _
  $region3: #{rgcn_forward.1} parent=0 // pred_check_branch
    %12 = sbr.rel (0) target = $region5
  $region4: #{rgcn_forward.1} parent=0 // pred_region
    _
  $region5: #{rgcn_forward.1} parent=0 // pred_fallthru
    _
  // Predicated region
  $region6: #{rgcn_forward.1} parent=0 // pred_check
    _
  $region7: #{rgcn_forward.1} parent=0 // pred_check_branch
    %14 = sbr.rel (0) target = $region9
  $region8: #{rgcn_forward.1} parent=0 // pred_region
    _
  $region9: #{rgcn_forward.1} parent=0 // pred_fallthru
    _
  // Predicated region
  $region10: #{rgcn_forward.1} parent=0 // pred_check
    _
  $region11: #{rgcn_forward.1} parent=0 // pred_check_branch
    %16 = sbr.rel (0) target = $region13
  $region12: #{rgcn_forward.1} parent=0 // pred_region
    _
  $region13: #{rgcn_forward.1} parent=0 // pred_fallthru
    _
  // Predicated region
  $region14: #{rgcn_forward.1} parent=0 // pred_check
    _
  $region15: #{rgcn_forward.1} parent=0 // pred_check_branch
    %18 = sbr.rel (0) target = $region17
  $region16: #{rgcn_forward.1} parent=0 // pred_region
    _
  $region17: #{rgcn_forward.1} parent=0 // pred_fallthru
    _
  // Predicated region
  $region18: #{rgcn_forward.1} parent=0 // pred_check
    _
  $region19: #{rgcn_forward.1} parent=0 // pred_check_branch
    %20 = sbr.rel (0) target = $region21
  $region20: #{rgcn_forward.1} parent=0 // pred_region
    _
  $region21: #{rgcn_forward.1} parent=0 // pred_fallthru
    _
  // Predicated region
  $region22: #{rgcn_forward.1} parent=0 // pred_check
    _
  $region23: #{rgcn_forward.1} parent=0 // pred_check_branch
    %22 = sbr.rel (0) target = $region25
  $region24: #{rgcn_forward.1} parent=0 // pred_region
    _
  $region25: #{rgcn_forward.1} parent=0 // pred_fallthru
    _
  %v23 = vld [vmem:[%s0] sm:$0xff]
  %v24 = vld [vmem:[%s0 + $0x8] sm:$0xff]
  %v25 = vld [vmem:[%s0 + $0x10] sm:$0xff]
  %v26 = vld [vmem:[%s0 + $0x18] sm:$0xff]
  %v27 = vld [vmem:[%s0 + $0x20] sm:$0xff]
  %v28 = vld [vmem:[%s0 + $0x28] sm:$0xff]
  %v29 = vld [vmem:[%s0 + $0x30] sm:$0xff]
  %v30 = vld [vmem:[%s0 + $0x38] sm:$0xff]
  %v31 = vld [vmem:[%s0 + $0x40] sm:$0xff]
  %v32 = vld [vmem:[%s0 + $0x48] sm:$0xff]
  %v33 = vld [vmem:[%s0 + $0x50] sm:$0xff]
  %v34 = vld [vmem:[%s0 + $0x58] sm:$0xff]
  %v35 = vld [vmem:[%s0 + $0x60] sm:$0xff]
  %v36 = vld [vmem:[%s0 + $0x68] sm:$0xff]
  %v37 = vld [vmem:[%s0 + $0x70] sm:$0xff]
  %v38 = vld [vmem:[%s0 + $0x78] sm:$0xff]
  %v39 = vld [vmem:[%s0 + $0x80] sm:$0xff]
  %v40 = vld [vmem:[%s0 + $0x88] sm:$0xff]
  %v41 = vld [vmem:[%s0 + $0x90] sm:$0xff]
  %v42 = vld [vmem:[%s0 + $0x98] sm:$0xff]
  %v43 = vld [vmem:[%s0 + $0xa0] sm:$0xff]
  %v44 = vld [vmem:[%s0 + $0xa8] sm:$0xff]
  %v45 = vld [vmem:[%s0 + $0xb0] sm:$0xff]
  %v46 = vld [vmem:[%s0 + $0xb8] sm:$0xff]
  %v47 = vld [vmem:[%s0 + $0xc0] sm:$0xff]
  %v48 = vld [vmem:[%s0 + $0xc8] sm:$0xff]
  %v49 = vld [vmem:[%s0 + $0xd0] sm:$0xff]
  %v50 = vld [vmem:[%s0 + $0xd8] sm:$0xff]
  %v51 = vld [vmem:[%s1] sm:$0xff]
  %v52 = vld [vmem:[%s1 + $0x8] sm:$0xff]
  %v53 = vld [vmem:[%s1 + $0x10] sm:$0xff]
  %v54 = vld [vmem:[%s1 + $0x18] sm:$0xff]
  %vm55 = vcmask 261120
  %v57 = vsel %vm55, %v23, 0
  %v60 = vsel %vm55, %v24, 0
  %v63 = vsel %vm55, %v25, 0
  %v66 = vsel %vm55, %v26, 0
  %v69 = vsel %vm55, %v27, 0
  %v72 = vsel %vm55, %v28, 0
  %v75 = vsel %vm55, %v29, 0
  %v78 = vsel %vm55, %v30, 0
  %v81 = vsel %vm55, %v31, 0
  %v84 = vsel %vm55, %v32, 0
  %v87 = vsel %vm55, %v33, 0
  %v90 = vsel %vm55, %v34, 0
  %v93 = vsel %vm55, %v35, 0
  %v96 = vsel %vm55, %v36, 0
  %v99 = vsel %vm55, %v37, 0
  %v102 = vsel %vm55, %v38, 0
  %v105 = vsel %vm55, %v39, 0
  %v108 = vsel %vm55, %v40, 0
  %v111 = vsel %vm55, %v41, 0
  %v114 = vsel %vm55, %v42, 0
  %v117 = vsel %vm55, %v43, 0
  %v120 = vsel %vm55, %v44, 0
  %v123 = vsel %vm55, %v45, 0
  %v126 = vsel %vm55, %v46, 0
  %v129 = vsel %vm55, %v47, 0
  %v132 = vsel %vm55, %v48, 0
  %v135 = vsel %vm55, %v49, 0
  %v138 = vsel %vm55, %v50, 0
  %140 = vmatpush.msra.mxu0 0.0
  %141 = vmatpush.msra.mxu0 0.0
  %142 = vmatpush.msra.mxu0 0.0
  %143 = vmatpush.msra.mxu0 0.0
  %144 = vmatpush.msra.mxu0 0.0
  %145 = vmatpush.msra.mxu0 0.0
  %146 = vmatpush.msra.mxu0 0.0
  %147 = vmatpush.msra.mxu0 0.0
  %148 = vmatpush.msra.mxu0 0.0
  %149 = vmatpush.msra.mxu0 0.0
  %150 = vmatpush.msra.mxu0 0.0
  %151 = vmatpush.msra.mxu0 0.0
  %152 = vmatpush.msra.mxu0 %v54
  %153 = vmatpush.msra.mxu0 %v53
  %154 = vmatpush.msra.mxu0 %v52
  %155 = vmatpush.msra.mxu0 %v51
  %156 = vmatmul.f32.gmra.mxu0 %v57
  %v157 = vpop.f32.mrf.mxu0
  %v158 = vadd.f32 0.0, %v157
  %159 = vmatmul.f32.gmra.mxu0 %v60
  %v160 = vpop.f32.mrf.mxu0
  %v161 = vadd.f32 0.0, %v160
  %162 = vmatmul.f32.gmra.mxu0 %v63
  %v163 = vpop.f32.mrf.mxu0
  %v164 = vadd.f32 0.0, %v163
  %165 = vmatmul.f32.gmra.mxu0 %v66
  %v166 = vpop.f32.mrf.mxu0
  %v167 = vadd.f32 0.0, %v166
  %168 = vmatmul.f32.gmra.mxu0 %v69
  %v169 = vpop.f32.mrf.mxu0
  %v170 = vadd.f32 0.0, %v169
  %171 = vmatmul.f32.gmra.mxu0 %v72
  %v172 = vpop.f32.mrf.mxu0
  %v173 = vadd.f32 0.0, %v172
  %174 = vmatmul.f32.gmra.mxu0 %v75
  %v175 = vpop.f32.mrf.mxu0
  %v176 = vadd.f32 0.0, %v175
  %177 = vmatmul.f32.gmra.mxu0 %v78
  %v178 = vpop.f32.mrf.mxu0
  %v179 = vadd.f32 0.0, %v178
  %180 = vmatmul.f32.gmra.mxu0 %v81
  %v181 = vpop.f32.mrf.mxu0
  %v182 = vadd.f32 0.0, %v181
  %183 = vmatmul.f32.gmra.mxu0 %v84
  %v184 = vpop.f32.mrf.mxu0
  %v185 = vadd.f32 0.0, %v184
  %186 = vmatmul.f32.gmra.mxu0 %v87
  %v187 = vpop.f32.mrf.mxu0
  %v188 = vadd.f32 0.0, %v187
  %189 = vmatmul.f32.gmra.mxu0 %v90
  %v190 = vpop.f32.mrf.mxu0
  %v191 = vadd.f32 0.0, %v190
  %192 = vmatmul.f32.gmra.mxu0 %v93
  %v193 = vpop.f32.mrf.mxu0
  %v194 = vadd.f32 0.0, %v193
  %195 = vmatmul.f32.gmra.mxu0 %v96
  %v196 = vpop.f32.mrf.mxu0
  %v197 = vadd.f32 0.0, %v196
  %198 = vmatmul.f32.gmra.mxu0 %v99
  %v199 = vpop.f32.mrf.mxu0
  %v200 = vadd.f32 0.0, %v199
  %201 = vmatmul.f32.gmra.mxu0 %v102
  %v202 = vpop.f32.mrf.mxu0
  %v203 = vadd.f32 0.0, %v202
  %204 = vmatmul.f32.gmra.mxu0 %v105
  %v205 = vpop.f32.mrf.mxu0
  %v206 = vadd.f32 0.0, %v205
  %207 = vmatmul.f32.gmra.mxu0 %v108
  %v208 = vpop.f32.mrf.mxu0
  %v209 = vadd.f32 0.0, %v208
  %210 = vmatmul.f32.gmra.mxu0 %v111
  %v211 = vpop.f32.mrf.mxu0
  %v212 = vadd.f32 0.0, %v211
  %213 = vmatmul.f32.gmra.mxu0 %v114
  %v214 = vpop.f32.mrf.mxu0
  %v215 = vadd.f32 0.0, %v214
  %216 = vmatmul.f32.gmra.mxu0 %v117
  %v217 = vpop.f32.mrf.mxu0
  %v218 = vadd.f32 0.0, %v217
  %219 = vmatmul.f32.gmra.mxu0 %v120
  %v220 = vpop.f32.mrf.mxu0
  %v221 = vadd.f32 0.0, %v220
  %222 = vmatmul.f32.gmra.mxu0 %v123
  %v223 = vpop.f32.mrf.mxu0
  %v224 = vadd.f32 0.0, %v223
  %225 = vmatmul.f32.gmra.mxu0 %v126
  %v226 = vpop.f32.mrf.mxu0
  %v227 = vadd.f32 0.0, %v226
  %228 = vmatmul.f32.gmra.mxu0 %v129
  %v229 = vpop.f32.mrf.mxu0
  %v230 = vadd.f32 0.0, %v229
  %231 = vmatmul.f32.gmra.mxu0 %v132
  %v232 = vpop.f32.mrf.mxu0
  %v233 = vadd.f32 0.0, %v232
  %234 = vmatmul.f32.gmra.mxu0 %v135
  %v235 = vpop.f32.mrf.mxu0
  %v236 = vadd.f32 0.0, %v235
  %237 = vmatmul.f32.gmra.mxu0 %v138
  %v238 = vpop.f32.mrf.mxu0
  %v239 = vadd.f32 0.0, %v238
  %240 = vdwg.mxu0
  %v241 = vld [vmem:[%s2] sm:$0xff]
  %v242 = vld [vmem:[%s2 + $0x8] sm:$0xff]
  %s243 = scalar_lea.vmem %s2, 16
  %v244 = vld [vmem:[%s243] sm:$0xff]
  %v245 = vld [vmem:[%s243 + $0x8] sm:$0xff]
  %vm246 = vcmask 130048
  %v248 = vsel %vm246, %v170, 0
  %v251 = vsel %vm246, %v173, 0
  %v254 = vsel %vm246, %v176, 0
  %v257 = vsel %vm246, %v179, 0
  %259 = vmatpush.msra.mxu0 0.0
  %260 = vmatpush.msra.mxu0 0.0
  %261 = vmatpush.msra.mxu0 0.0
  %262 = vmatpush.msra.mxu0 0.0
  %263 = vmatpush.msra.mxu0 0.0
  %264 = vmatpush.msra.mxu0 0.0
  %265 = vmatpush.msra.mxu0 0.0
  %266 = vmatpush.msra.mxu0 0.0
  %267 = vmatpush.msra.mxu0 0.0
  %268 = vmatpush.msra.mxu0 0.0
  %269 = vmatpush.msra.mxu0 0.0
  %270 = vmatpush.msra.mxu0 0.0
  %271 = vmatpush.msra.mxu0 0.0
  %272 = vmatpush.msra.mxu0 0.0
  %273 = vmatpush.msra.mxu0 %v245
  %274 = vmatpush.msra.mxu0 %v244
  %275 = vmatmul.f32.gmra.mxu0 %v248
  %v276 = vpop.f32.mrf.mxu0
  %v277 = vadd.f32 0.0, %v276
  %278 = vmatmul.f32.gmra.mxu0 %v251
  %v279 = vpop.f32.mrf.mxu0
  %v280 = vadd.f32 0.0, %v279
  %281 = vmatmul.f32.gmra.mxu0 %v254
  %v282 = vpop.f32.mrf.mxu0
  %v283 = vadd.f32 0.0, %v282
  %284 = vmatmul.f32.gmra.mxu0 %v257
  %v285 = vpop.f32.mrf.mxu0
  %v286 = vadd.f32 0.0, %v285
  %287 = vdwg.mxu0
  %v289 = vsel %vm246, %v158, 0
  %v292 = vsel %vm246, %v161, 0
  %v295 = vsel %vm246, %v164, 0
  %v298 = vsel %vm246, %v167, 0
  %300 = vmatpush.msra.mxu0 0.0
  %301 = vmatpush.msra.mxu0 0.0
  %302 = vmatpush.msra.mxu0 0.0
  %303 = vmatpush.msra.mxu0 0.0
  %304 = vmatpush.msra.mxu0 0.0
  %305 = vmatpush.msra.mxu0 0.0
  %306 = vmatpush.msra.mxu0 0.0
  %307 = vmatpush.msra.mxu0 0.0
  %308 = vmatpush.msra.mxu0 0.0
  %309 = vmatpush.msra.mxu0 0.0
  %310 = vmatpush.msra.mxu0 0.0
  %311 = vmatpush.msra.mxu0 0.0
  %312 = vmatpush.msra.mxu0 0.0
  %313 = vmatpush.msra.mxu0 0.0
  %314 = vmatpush.msra.mxu0 %v242
  %315 = vmatpush.msra.mxu0 %v241
  %316 = vmatmul.f32.gmra.mxu0 %v289
  %v317 = vpop.f32.mrf.mxu0
  %v318 = vadd.f32 %v277, %v317
  %319 = vmatmul.f32.gmra.mxu0 %v292
  %v320 = vpop.f32.mrf.mxu0
  %v321 = vadd.f32 %v280, %v320
  %322 = vmatmul.f32.gmra.mxu0 %v295
  %v323 = vpop.f32.mrf.mxu0
  %v324 = vadd.f32 %v283, %v323
  %325 = vmatmul.f32.gmra.mxu0 %v298
  %v326 = vpop.f32.mrf.mxu0
  %v327 = vadd.f32 %v286, %v326
  %328 = vdwg.mxu0
  %s329 = scalar_lea.vmem %s2, 32
  %v330 = vld [vmem:[%s329] sm:$0xff]
  %v331 = vld [vmem:[%s329 + $0x8] sm:$0xff]
  %v333 = vsel %vm246, %v182, 0
  %v336 = vsel %vm246, %v185, 0
  %v339 = vsel %vm246, %v188, 0
  %v342 = vsel %vm246, %v191, 0
  %344 = vmatpush.msra.mxu0 0.0
  %345 = vmatpush.msra.mxu0 0.0
  %346 = vmatpush.msra.mxu0 0.0
  %347 = vmatpush.msra.mxu0 0.0
  %348 = vmatpush.msra.mxu0 0.0
  %349 = vmatpush.msra.mxu0 0.0
  %350 = vmatpush.msra.mxu0 0.0
  %351 = vmatpush.msra.mxu0 0.0
  %352 = vmatpush.msra.mxu0 0.0
  %353 = vmatpush.msra.mxu0 0.0
  %354 = vmatpush.msra.mxu0 0.0
  %355 = vmatpush.msra.mxu0 0.0
  %356 = vmatpush.msra.mxu0 0.0
  %357 = vmatpush.msra.mxu0 0.0
  %358 = vmatpush.msra.mxu0 %v331
  %359 = vmatpush.msra.mxu0 %v330
  %360 = vmatmul.f32.gmra.mxu0 %v333
  %v361 = vpop.f32.mrf.mxu0
  %v362 = vadd.f32 0.0, %v361
  %363 = vmatmul.f32.gmra.mxu0 %v336
  %v364 = vpop.f32.mrf.mxu0
  %v365 = vadd.f32 0.0, %v364
  %366 = vmatmul.f32.gmra.mxu0 %v339
  %v367 = vpop.f32.mrf.mxu0
  %v368 = vadd.f32 0.0, %v367
  %369 = vmatmul.f32.gmra.mxu0 %v342
  %v370 = vpop.f32.mrf.mxu0
  %v371 = vadd.f32 0.0, %v370
  %372 = vdwg.mxu0
  %v373 = vadd.f32 %v318, %v362
  %v374 = vadd.f32 %v321, %v365
  %v375 = vadd.f32 %v324, %v368
  %v376 = vadd.f32 %v327, %v371
  %s377 = scalar_lea.vmem %s2, 48
  %v378 = vld [vmem:[%s377] sm:$0xff]
  %v379 = vld [vmem:[%s377 + $0x8] sm:$0xff]
  %v381 = vsel %vm246, %v194, 0
  %v384 = vsel %vm246, %v197, 0
  %v387 = vsel %vm246, %v200, 0
  %v390 = vsel %vm246, %v203, 0
  %392 = vmatpush.msra.mxu0 0.0
  %393 = vmatpush.msra.mxu0 0.0
  %394 = vmatpush.msra.mxu0 0.0
  %395 = vmatpush.msra.mxu0 0.0
  %396 = vmatpush.msra.mxu0 0.0
  %397 = vmatpush.msra.mxu0 0.0
  %398 = vmatpush.msra.mxu0 0.0
  %399 = vmatpush.msra.mxu0 0.0
  %400 = vmatpush.msra.mxu0 0.0
  %401 = vmatpush.msra.mxu0 0.0
  %402 = vmatpush.msra.mxu0 0.0
  %403 = vmatpush.msra.mxu0 0.0
  %404 = vmatpush.msra.mxu0 0.0
  %405 = vmatpush.msra.mxu0 0.0
  %406 = vmatpush.msra.mxu0 %v379
  %407 = vmatpush.msra.mxu0 %v378
  %408 = vmatmul.f32.gmra.mxu0 %v381
  %v409 = vpop.f32.mrf.mxu0
  %v410 = vadd.f32 0.0, %v409
  %411 = vmatmul.f32.gmra.mxu0 %v384
  %v412 = vpop.f32.mrf.mxu0
  %v413 = vadd.f32 0.0, %v412
  %414 = vmatmul.f32.gmra.mxu0 %v387
  %v415 = vpop.f32.mrf.mxu0
  %v416 = vadd.f32 0.0, %v415
  %417 = vmatmul.f32.gmra.mxu0 %v390
  %v418 = vpop.f32.mrf.mxu0
  %v419 = vadd.f32 0.0, %v418
  %420 = vdwg.mxu0
  %v421 = vadd.f32 %v373, %v410
  %v422 = vadd.f32 %v374, %v413
  %v423 = vadd.f32 %v375, %v416
  %v424 = vadd.f32 %v376, %v419
  %s425 = scalar_lea.vmem %s2, 64
  %v426 = vld [vmem:[%s425] sm:$0xff]
  %v427 = vld [vmem:[%s425 + $0x8] sm:$0xff]
  %v429 = vsel %vm246, %v206, 0
  %v432 = vsel %vm246, %v209, 0
  %v435 = vsel %vm246, %v212, 0
  %v438 = vsel %vm246, %v215, 0
  %440 = vmatpush.msra.mxu0 0.0
  %441 = vmatpush.msra.mxu0 0.0
  %442 = vmatpush.msra.mxu0 0.0
  %443 = vmatpush.msra.mxu0 0.0
  %444 = vmatpush.msra.mxu0 0.0
  %445 = vmatpush.msra.mxu0 0.0
  %446 = vmatpush.msra.mxu0 0.0
  %447 = vmatpush.msra.mxu0 0.0
  %448 = vmatpush.msra.mxu0 0.0
  %449 = vmatpush.msra.mxu0 0.0
  %450 = vmatpush.msra.mxu0 0.0
  %451 = vmatpush.msra.mxu0 0.0
  %452 = vmatpush.msra.mxu0 0.0
  %453 = vmatpush.msra.mxu0 0.0
  %454 = vmatpush.msra.mxu0 %v427
  %455 = vmatpush.msra.mxu0 %v426
  %456 = vmatmul.f32.gmra.mxu0 %v429
  %v457 = vpop.f32.mrf.mxu0
  %v458 = vadd.f32 0.0, %v457
  %459 = vmatmul.f32.gmra.mxu0 %v432
  %v460 = vpop.f32.mrf.mxu0
  %v461 = vadd.f32 0.0, %v460
  %462 = vmatmul.f32.gmra.mxu0 %v435
  %v463 = vpop.f32.mrf.mxu0
  %v464 = vadd.f32 0.0, %v463
  %465 = vmatmul.f32.gmra.mxu0 %v438
  %v466 = vpop.f32.mrf.mxu0
  %v467 = vadd.f32 0.0, %v466
  %468 = vdwg.mxu0
  %v469 = vadd.f32 %v421, %v458
  %v470 = vadd.f32 %v422, %v461
  %v471 = vadd.f32 %v423, %v464
  %v472 = vadd.f32 %v424, %v467
  %s473 = scalar_lea.vmem %s2, 80
  %v474 = vld [vmem:[%s473] sm:$0xff]
  %v475 = vld [vmem:[%s473 + $0x8] sm:$0xff]
  %v477 = vsel %vm246, %v218, 0
  %v480 = vsel %vm246, %v221, 0
  %v483 = vsel %vm246, %v224, 0
  %v486 = vsel %vm246, %v227, 0
  %488 = vmatpush.msra.mxu0 0.0
  %489 = vmatpush.msra.mxu0 0.0
  %490 = vmatpush.msra.mxu0 0.0
  %491 = vmatpush.msra.mxu0 0.0
  %492 = vmatpush.msra.mxu0 0.0
  %493 = vmatpush.msra.mxu0 0.0
  %494 = vmatpush.msra.mxu0 0.0
  %495 = vmatpush.msra.mxu0 0.0
  %496 = vmatpush.msra.mxu0 0.0
  %497 = vmatpush.msra.mxu0 0.0
  %498 = vmatpush.msra.mxu0 0.0
  %499 = vmatpush.msra.mxu0 0.0
  %500 = vmatpush.msra.mxu0 0.0
  %501 = vmatpush.msra.mxu0 0.0
  %502 = vmatpush.msra.mxu0 %v475
  %503 = vmatpush.msra.mxu0 %v474
  %504 = vmatmul.f32.gmra.mxu0 %v477
  %v505 = vpop.f32.mrf.mxu0
  %v506 = vadd.f32 0.0, %v505
  %507 = vmatmul.f32.gmra.mxu0 %v480
  %v508 = vpop.f32.mrf.mxu0
  %v509 = vadd.f32 0.0, %v508
  %510 = vmatmul.f32.gmra.mxu0 %v483
  %v511 = vpop.f32.mrf.mxu0
  %v512 = vadd.f32 0.0, %v511
  %513 = vmatmul.f32.gmra.mxu0 %v486
  %v514 = vpop.f32.mrf.mxu0
  %v515 = vadd.f32 0.0, %v514
  %516 = vdwg.mxu0
  %v517 = vadd.f32 %v469, %v506
  %v518 = vadd.f32 %v470, %v509
  %v519 = vadd.f32 %v471, %v512
  %v520 = vadd.f32 %v472, %v515
  %s521 = scalar_lea.vmem %s2, 96
  %v522 = vld [vmem:[%s521] sm:$0xff]
  %v523 = vld [vmem:[%s521 + $0x8] sm:$0xff]
  %v525 = vsel %vm246, %v230, 0
  %v528 = vsel %vm246, %v233, 0
  %v531 = vsel %vm246, %v236, 0
  %v534 = vsel %vm246, %v239, 0
  %536 = vmatpush.msra.mxu0 0.0
  %537 = vmatpush.msra.mxu0 0.0
  %538 = vmatpush.msra.mxu0 0.0
  %539 = vmatpush.msra.mxu0 0.0
  %540 = vmatpush.msra.mxu0 0.0
  %541 = vmatpush.msra.mxu0 0.0
  %542 = vmatpush.msra.mxu0 0.0
  %543 = vmatpush.msra.mxu0 0.0
  %544 = vmatpush.msra.mxu0 0.0
  %545 = vmatpush.msra.mxu0 0.0
  %546 = vmatpush.msra.mxu0 0.0
  %547 = vmatpush.msra.mxu0 0.0
  %548 = vmatpush.msra.mxu0 0.0
  %549 = vmatpush.msra.mxu0 0.0
  %550 = vmatpush.msra.mxu0 %v523
  %551 = vmatpush.msra.mxu0 %v522
  %552 = vmatmul.f32.gmra.mxu0 %v525
  %v553 = vpop.f32.mrf.mxu0
  %v554 = vadd.f32 0.0, %v553
  %555 = vmatmul.f32.gmra.mxu0 %v528
  %v556 = vpop.f32.mrf.mxu0
  %v557 = vadd.f32 0.0, %v556
  %558 = vmatmul.f32.gmra.mxu0 %v531
  %v559 = vpop.f32.mrf.mxu0
  %v560 = vadd.f32 0.0, %v559
  %561 = vmatmul.f32.gmra.mxu0 %v534
  %v562 = vpop.f32.mrf.mxu0
  %v563 = vadd.f32 0.0, %v562
  %564 = vdwg.mxu0
  %v565 = vadd.f32 %v517, %v554
  %v566 = vadd.f32 %v518, %v557
  %v567 = vadd.f32 %v519, %v560
  %v568 = vadd.f32 %v520, %v563
  %v569 = vld [vmem:[%s3] sm:$0x1]
  %v571 = vperm.slane %v569, 0
  %v573 = vadd.f32 %v565, %v571
  %v574 = vadd.f32 %v566, %v571
  %v575 = vadd.f32 %v567, %v571
  %v576 = vadd.f32 %v568, %v571
  %v577 = vmax.f32 %v573, 0.0
  %v578 = vmax.f32 %v574, 0.0
  %v579 = vmax.f32 %v575, 0.0
  %v580 = vmax.f32 %v576, 0.0
  %581 = vmatpush.msra.mxu0 0.0
  %582 = vmatpush.msra.mxu0 0.0
  %583 = vmatpush.msra.mxu0 0.0
  %584 = vmatpush.msra.mxu0 0.0
  %585 = vmatpush.msra.mxu0 0.0
  %586 = vmatpush.msra.mxu0 0.0
  %587 = vmatpush.msra.mxu0 0.0
  %588 = vmatpush.msra.mxu0 0.0
  %589 = vmatpush.msra.mxu0 0.0
  %590 = vmatpush.msra.mxu0 0.0
  %591 = vmatpush.msra.mxu0 0.0
  %592 = vmatpush.msra.mxu0 0.0
  %593 = vmatpush.msra.mxu0 %v580
  %594 = vmatpush.msra.mxu0 %v579
  %595 = vmatpush.msra.mxu0 %v578
  %596 = vmatpush.msra.mxu0 %v577
  %597 = vmatmul.f32.gmra.mxu0 %v57
  %v598 = vpop.f32.mrf.mxu0
  %v599 = vadd.f32 0.0, %v598
  %600 = vmatmul.f32.gmra.mxu0 %v60
  %v601 = vpop.f32.mrf.mxu0
  %v602 = vadd.f32 0.0, %v601
  %603 = vmatmul.f32.gmra.mxu0 %v63
  %v604 = vpop.f32.mrf.mxu0
  %v605 = vadd.f32 0.0, %v604
  %606 = vmatmul.f32.gmra.mxu0 %v66
  %v607 = vpop.f32.mrf.mxu0
  %v608 = vadd.f32 0.0, %v607
  %609 = vmatmul.f32.gmra.mxu0 %v69
  %v610 = vpop.f32.mrf.mxu0
  %v611 = vadd.f32 0.0, %v610
  %612 = vmatmul.f32.gmra.mxu0 %v72
  %v613 = vpop.f32.mrf.mxu0
  %v614 = vadd.f32 0.0, %v613
  %615 = vmatmul.f32.gmra.mxu0 %v75
  %v616 = vpop.f32.mrf.mxu0
  %v617 = vadd.f32 0.0, %v616
  %618 = vmatmul.f32.gmra.mxu0 %v78
  %v619 = vpop.f32.mrf.mxu0
  %v620 = vadd.f32 0.0, %v619
  %621 = vmatmul.f32.gmra.mxu0 %v81
  %v622 = vpop.f32.mrf.mxu0
  %v623 = vadd.f32 0.0, %v622
  %624 = vmatmul.f32.gmra.mxu0 %v84
  %v625 = vpop.f32.mrf.mxu0
  %v626 = vadd.f32 0.0, %v625
  %627 = vmatmul.f32.gmra.mxu0 %v87
  %v628 = vpop.f32.mrf.mxu0
  %v629 = vadd.f32 0.0, %v628
  %630 = vmatmul.f32.gmra.mxu0 %v90
  %v631 = vpop.f32.mrf.mxu0
  %v632 = vadd.f32 0.0, %v631
  %633 = vmatmul.f32.gmra.mxu0 %v93
  %v634 = vpop.f32.mrf.mxu0
  %v635 = vadd.f32 0.0, %v634
  %636 = vmatmul.f32.gmra.mxu0 %v96
  %v637 = vpop.f32.mrf.mxu0
  %v638 = vadd.f32 0.0, %v637
  %639 = vmatmul.f32.gmra.mxu0 %v99
  %v640 = vpop.f32.mrf.mxu0
  %v641 = vadd.f32 0.0, %v640
  %642 = vmatmul.f32.gmra.mxu0 %v102
  %v643 = vpop.f32.mrf.mxu0
  %v644 = vadd.f32 0.0, %v643
  %645 = vmatmul.f32.gmra.mxu0 %v105
  %v646 = vpop.f32.mrf.mxu0
  %v647 = vadd.f32 0.0, %v646
  %648 = vmatmul.f32.gmra.mxu0 %v108
  %v649 = vpop.f32.mrf.mxu0
  %v650 = vadd.f32 0.0, %v649
  %651 = vmatmul.f32.gmra.mxu0 %v111
  %v652 = vpop.f32.mrf.mxu0
  %v653 = vadd.f32 0.0, %v652
  %654 = vmatmul.f32.gmra.mxu0 %v114
  %v655 = vpop.f32.mrf.mxu0
  %v656 = vadd.f32 0.0, %v655
  %657 = vmatmul.f32.gmra.mxu0 %v117
  %v658 = vpop.f32.mrf.mxu0
  %v659 = vadd.f32 0.0, %v658
  %660 = vmatmul.f32.gmra.mxu0 %v120
  %v661 = vpop.f32.mrf.mxu0
  %v662 = vadd.f32 0.0, %v661
  %663 = vmatmul.f32.gmra.mxu0 %v123
  %v664 = vpop.f32.mrf.mxu0
  %v665 = vadd.f32 0.0, %v664
  %666 = vmatmul.f32.gmra.mxu0 %v126
  %v667 = vpop.f32.mrf.mxu0
  %v668 = vadd.f32 0.0, %v667
  %669 = vmatmul.f32.gmra.mxu0 %v129
  %v670 = vpop.f32.mrf.mxu0
  %v671 = vadd.f32 0.0, %v670
  %672 = vmatmul.f32.gmra.mxu0 %v132
  %v673 = vpop.f32.mrf.mxu0
  %v674 = vadd.f32 0.0, %v673
  %675 = vmatmul.f32.gmra.mxu0 %v135
  %v676 = vpop.f32.mrf.mxu0
  %v677 = vadd.f32 0.0, %v676
  %678 = vmatmul.f32.gmra.mxu0 %v138
  %v679 = vpop.f32.mrf.mxu0
  %v680 = vadd.f32 0.0, %v679
  %681 = vdwg.mxu0
  %v682 = vld [vmem:[%s4] sm:$0xff]
  %v683 = vld [vmem:[%s4 + $0x8] sm:$0xff]
  %v684 = vld [vmem:[%s4 + $0x10] sm:$0xff]
  %v685 = vld [vmem:[%s4 + $0x18] sm:$0xff]
  %s686 = scalar_lea.vmem %s4, 32
  %v687 = vld [vmem:[%s686] sm:$0xff]
  %v688 = vld [vmem:[%s686 + $0x8] sm:$0xff]
  %v689 = vld [vmem:[%s686 + $0x10] sm:$0xff]
  %v690 = vld [vmem:[%s686 + $0x18] sm:$0xff]
  %v692 = vsel %vm55, %v611, 0
  %v695 = vsel %vm55, %v614, 0
  %v698 = vsel %vm55, %v617, 0
  %v701 = vsel %vm55, %v620, 0
  %703 = vmatpush.msra.mxu0 0.0
  %704 = vmatpush.msra.mxu0 0.0
  %705 = vmatpush.msra.mxu0 0.0
  %706 = vmatpush.msra.mxu0 0.0
  %707 = vmatpush.msra.mxu0 0.0
  %708 = vmatpush.msra.mxu0 0.0
  %709 = vmatpush.msra.mxu0 0.0
  %710 = vmatpush.msra.mxu0 0.0
  %711 = vmatpush.msra.mxu0 0.0
  %712 = vmatpush.msra.mxu0 0.0
  %713 = vmatpush.msra.mxu0 0.0
  %714 = vmatpush.msra.mxu0 0.0
  %715 = vmatpush.msra.mxu0 %v690
  %716 = vmatpush.msra.mxu0 %v689
  %717 = vmatpush.msra.mxu0 %v688
  %718 = vmatpush.msra.mxu0 %v687
  %719 = vmatmul.f32.gmra.mxu0 %v692
  %v720 = vpop.f32.mrf.mxu0
  %v721 = vadd.f32 0.0, %v720
  %722 = vmatmul.f32.gmra.mxu0 %v695
  %v723 = vpop.f32.mrf.mxu0
  %v724 = vadd.f32 0.0, %v723
  %725 = vmatmul.f32.gmra.mxu0 %v698
  %v726 = vpop.f32.mrf.mxu0
  %v727 = vadd.f32 0.0, %v726
  %728 = vmatmul.f32.gmra.mxu0 %v701
  %v729 = vpop.f32.mrf.mxu0
  %v730 = vadd.f32 0.0, %v729
  %731 = vdwg.mxu0
  %v733 = vsel %vm55, %v599, 0
  %v736 = vsel %vm55, %v602, 0
  %v739 = vsel %vm55, %v605, 0
  %v742 = vsel %vm55, %v608, 0
  %744 = vmatpush.msra.mxu0 0.0
  %745 = vmatpush.msra.mxu0 0.0
  %746 = vmatpush.msra.mxu0 0.0
  %747 = vmatpush.msra.mxu0 0.0
  %748 = vmatpush.msra.mxu0 0.0
  %749 = vmatpush.msra.mxu0 0.0
  %750 = vmatpush.msra.mxu0 0.0
  %751 = vmatpush.msra.mxu0 0.0
  %752 = vmatpush.msra.mxu0 0.0
  %753 = vmatpush.msra.mxu0 0.0
  %754 = vmatpush.msra.mxu0 0.0
  %755 = vmatpush.msra.mxu0 0.0
  %756 = vmatpush.msra.mxu0 %v685
  %757 = vmatpush.msra.mxu0 %v684
  %758 = vmatpush.msra.mxu0 %v683
  %759 = vmatpush.msra.mxu0 %v682
  %760 = vmatmul.f32.gmra.mxu0 %v733
  %v761 = vpop.f32.mrf.mxu0
  %v762 = vadd.f32 %v721, %v761
  %763 = vmatmul.f32.gmra.mxu0 %v736
  %v764 = vpop.f32.mrf.mxu0
  %v765 = vadd.f32 %v724, %v764
  %766 = vmatmul.f32.gmra.mxu0 %v739
  %v767 = vpop.f32.mrf.mxu0
  %v768 = vadd.f32 %v727, %v767
  %769 = vmatmul.f32.gmra.mxu0 %v742
  %v770 = vpop.f32.mrf.mxu0
  %v771 = vadd.f32 %v730, %v770
  %772 = vdwg.mxu0
  %s773 = scalar_lea.vmem %s4, 64
  %v774 = vld [vmem:[%s773] sm:$0xff]
  %v775 = vld [vmem:[%s773 + $0x8] sm:$0xff]
  %v776 = vld [vmem:[%s773 + $0x10] sm:$0xff]
  %v777 = vld [vmem:[%s773 + $0x18] sm:$0xff]
  %v779 = vsel %vm55, %v623, 0
  %v782 = vsel %vm55, %v626, 0
  %v785 = vsel %vm55, %v629, 0
  %v788 = vsel %vm55, %v632, 0
  %790 = vmatpush.msra.mxu0 0.0
  %791 = vmatpush.msra.mxu0 0.0
  %792 = vmatpush.msra.mxu0 0.0
  %793 = vmatpush.msra.mxu0 0.0
  %794 = vmatpush.msra.mxu0 0.0
  %795 = vmatpush.msra.mxu0 0.0
  %796 = vmatpush.msra.mxu0 0.0
  %797 = vmatpush.msra.mxu0 0.0
  %798 = vmatpush.msra.mxu0 0.0
  %799 = vmatpush.msra.mxu0 0.0
  %800 = vmatpush.msra.mxu0 0.0
  %801 = vmatpush.msra.mxu0 0.0
  %802 = vmatpush.msra.mxu0 %v777
  %803 = vmatpush.msra.mxu0 %v776
  %804 = vmatpush.msra.mxu0 %v775
  %805 = vmatpush.msra.mxu0 %v774
  %806 = vmatmul.f32.gmra.mxu0 %v779
  %v807 = vpop.f32.mrf.mxu0
  %v808 = vadd.f32 0.0, %v807
  %809 = vmatmul.f32.gmra.mxu0 %v782
  %v810 = vpop.f32.mrf.mxu0
  %v811 = vadd.f32 0.0, %v810
  %812 = vmatmul.f32.gmra.mxu0 %v785
  %v813 = vpop.f32.mrf.mxu0
  %v814 = vadd.f32 0.0, %v813
  %815 = vmatmul.f32.gmra.mxu0 %v788
  %v816 = vpop.f32.mrf.mxu0
  %v817 = vadd.f32 0.0, %v816
  %818 = vdwg.mxu0
  %v819 = vadd.f32 %v762, %v808
  %v820 = vadd.f32 %v765, %v811
  %v821 = vadd.f32 %v768, %v814
  %v822 = vadd.f32 %v771, %v817
  %s823 = scalar_lea.vmem %s4, 96
  %v824 = vld [vmem:[%s823] sm:$0xff]
  %v825 = vld [vmem:[%s823 + $0x8] sm:$0xff]
  %v826 = vld [vmem:[%s823 + $0x10] sm:$0xff]
  %v827 = vld [vmem:[%s823 + $0x18] sm:$0xff]
  %v829 = vsel %vm55, %v635, 0
  %v832 = vsel %vm55, %v638, 0
  %v835 = vsel %vm55, %v641, 0
  %v838 = vsel %vm55, %v644, 0
  %840 = vmatpush.msra.mxu0 0.0
  %841 = vmatpush.msra.mxu0 0.0
  %842 = vmatpush.msra.mxu0 0.0
  %843 = vmatpush.msra.mxu0 0.0
  %844 = vmatpush.msra.mxu0 0.0
  %845 = vmatpush.msra.mxu0 0.0
  %846 = vmatpush.msra.mxu0 0.0
  %847 = vmatpush.msra.mxu0 0.0
  %848 = vmatpush.msra.mxu0 0.0
  %849 = vmatpush.msra.mxu0 0.0
  %850 = vmatpush.msra.mxu0 0.0
  %851 = vmatpush.msra.mxu0 0.0
  %852 = vmatpush.msra.mxu0 %v827
  %853 = vmatpush.msra.mxu0 %v826
  %854 = vmatpush.msra.mxu0 %v825
  %855 = vmatpush.msra.mxu0 %v824
  %856 = vmatmul.f32.gmra.mxu0 %v829
  %v857 = vpop.f32.mrf.mxu0
  %v858 = vadd.f32 0.0, %v857
  %859 = vmatmul.f32.gmra.mxu0 %v832
  %v860 = vpop.f32.mrf.mxu0
  %v861 = vadd.f32 0.0, %v860
  %862 = vmatmul.f32.gmra.mxu0 %v835
  %v863 = vpop.f32.mrf.mxu0
  %v864 = vadd.f32 0.0, %v863
  %865 = vmatmul.f32.gmra.mxu0 %v838
  %v866 = vpop.f32.mrf.mxu0
  %v867 = vadd.f32 0.0, %v866
  %868 = vdwg.mxu0
  %v869 = vadd.f32 %v819, %v858
  %v870 = vadd.f32 %v820, %v861
  %v871 = vadd.f32 %v821, %v864
  %v872 = vadd.f32 %v822, %v867
  %s873 = scalar_lea.vmem %s4, 128
  %v874 = vld [vmem:[%s873] sm:$0xff]
  %v875 = vld [vmem:[%s873 + $0x8] sm:$0xff]
  %v876 = vld [vmem:[%s873 + $0x10] sm:$0xff]
  %v877 = vld [vmem:[%s873 + $0x18] sm:$0xff]
  %v879 = vsel %vm55, %v647, 0
  %v882 = vsel %vm55, %v650, 0
  %v885 = vsel %vm55, %v653, 0
  %v888 = vsel %vm55, %v656, 0
  %890 = vmatpush.msra.mxu0 0.0
  %891 = vmatpush.msra.mxu0 0.0
  %892 = vmatpush.msra.mxu0 0.0
  %893 = vmatpush.msra.mxu0 0.0
  %894 = vmatpush.msra.mxu0 0.0
  %895 = vmatpush.msra.mxu0 0.0
  %896 = vmatpush.msra.mxu0 0.0
  %897 = vmatpush.msra.mxu0 0.0
  %898 = vmatpush.msra.mxu0 0.0
  %899 = vmatpush.msra.mxu0 0.0
  %900 = vmatpush.msra.mxu0 0.0
  %901 = vmatpush.msra.mxu0 0.0
  %902 = vmatpush.msra.mxu0 %v877
  %903 = vmatpush.msra.mxu0 %v876
  %904 = vmatpush.msra.mxu0 %v875
  %905 = vmatpush.msra.mxu0 %v874
  %906 = vmatmul.f32.gmra.mxu0 %v879
  %v907 = vpop.f32.mrf.mxu0
  %v908 = vadd.f32 0.0, %v907
  %909 = vmatmul.f32.gmra.mxu0 %v882
  %v910 = vpop.f32.mrf.mxu0
  %v911 = vadd.f32 0.0, %v910
  %912 = vmatmul.f32.gmra.mxu0 %v885
  %v913 = vpop.f32.mrf.mxu0
  %v914 = vadd.f32 0.0, %v913
  %915 = vmatmul.f32.gmra.mxu0 %v888
  %v916 = vpop.f32.mrf.mxu0
  %v917 = vadd.f32 0.0, %v916
  %918 = vdwg.mxu0
  %v919 = vadd.f32 %v869, %v908
  %v920 = vadd.f32 %v870, %v911
  %v921 = vadd.f32 %v871, %v914
  %v922 = vadd.f32 %v872, %v917
  %s923 = scalar_lea.vmem %s4, 160
  %v924 = vld [vmem:[%s923] sm:$0xff]
  %v925 = vld [vmem:[%s923 + $0x8] sm:$0xff]
  %v926 = vld [vmem:[%s923 + $0x10] sm:$0xff]
  %v927 = vld [vmem:[%s923 + $0x18] sm:$0xff]
  %v929 = vsel %vm55, %v659, 0
  %v932 = vsel %vm55, %v662, 0
  %v935 = vsel %vm55, %v665, 0
  %v938 = vsel %vm55, %v668, 0
  %940 = vmatpush.msra.mxu0 0.0
  %941 = vmatpush.msra.mxu0 0.0
  %942 = vmatpush.msra.mxu0 0.0
  %943 = vmatpush.msra.mxu0 0.0
  %944 = vmatpush.msra.mxu0 0.0
  %945 = vmatpush.msra.mxu0 0.0
  %946 = vmatpush.msra.mxu0 0.0
  %947 = vmatpush.msra.mxu0 0.0
  %948 = vmatpush.msra.mxu0 0.0
  %949 = vmatpush.msra.mxu0 0.0
  %950 = vmatpush.msra.mxu0 0.0
  %951 = vmatpush.msra.mxu0 0.0
  %952 = vmatpush.msra.mxu0 %v927
  %953 = vmatpush.msra.mxu0 %v926
  %954 = vmatpush.msra.mxu0 %v925
  %955 = vmatpush.msra.mxu0 %v924
  %956 = vmatmul.f32.gmra.mxu0 %v929
  %v957 = vpop.f32.mrf.mxu0
  %v958 = vadd.f32 0.0, %v957
  %959 = vmatmul.f32.gmra.mxu0 %v932
  %v960 = vpop.f32.mrf.mxu0
  %v961 = vadd.f32 0.0, %v960
  %962 = vmatmul.f32.gmra.mxu0 %v935
  %v963 = vpop.f32.mrf.mxu0
  %v964 = vadd.f32 0.0, %v963
  %965 = vmatmul.f32.gmra.mxu0 %v938
  %v966 = vpop.f32.mrf.mxu0
  %v967 = vadd.f32 0.0, %v966
  %968 = vdwg.mxu0
  %v969 = vadd.f32 %v919, %v958
  %v970 = vadd.f32 %v920, %v961
  %v971 = vadd.f32 %v921, %v964
  %v972 = vadd.f32 %v922, %v967
  %s973 = scalar_lea.vmem %s4, 192
  %v974 = vld [vmem:[%s973] sm:$0xff]
  %v975 = vld [vmem:[%s973 + $0x8] sm:$0xff]
  %v976 = vld [vmem:[%s973 + $0x10] sm:$0xff]
  %v977 = vld [vmem:[%s973 + $0x18] sm:$0xff]
  %v979 = vsel %vm55, %v671, 0
  %v982 = vsel %vm55, %v674, 0
  %v985 = vsel %vm55, %v677, 0
  %v988 = vsel %vm55, %v680, 0
  %990 = vmatpush.msra.mxu0 0.0
  %991 = vmatpush.msra.mxu0 0.0
  %992 = vmatpush.msra.mxu0 0.0
  %993 = vmatpush.msra.mxu0 0.0
  %994 = vmatpush.msra.mxu0 0.0
  %995 = vmatpush.msra.mxu0 0.0
  %996 = vmatpush.msra.mxu0 0.0
  %997 = vmatpush.msra.mxu0 0.0
  %998 = vmatpush.msra.mxu0 0.0
  %999 = vmatpush.msra.mxu0 0.0
  %1000 = vmatpush.msra.mxu0 0.0
  %1001 = vmatpush.msra.mxu0 0.0
  %1002 = vmatpush.msra.mxu0 %v977
  %1003 = vmatpush.msra.mxu0 %v976
  %1004 = vmatpush.msra.mxu0 %v975
  %1005 = vmatpush.msra.mxu0 %v974
  %1006 = vmatmul.f32.gmra.mxu0 %v979
  %v1007 = vpop.f32.mrf.mxu0
  %v1008 = vadd.f32 0.0, %v1007
  %1009 = vmatmul.f32.gmra.mxu0 %v982
  %v1010 = vpop.f32.mrf.mxu0
  %v1011 = vadd.f32 0.0, %v1010
  %1012 = vmatmul.f32.gmra.mxu0 %v985
  %v1013 = vpop.f32.mrf.mxu0
  %v1014 = vadd.f32 0.0, %v1013
  %1015 = vmatmul.f32.gmra.mxu0 %v988
  %v1016 = vpop.f32.mrf.mxu0
  %v1017 = vadd.f32 0.0, %v1016
  %1018 = vdwg.mxu0
  %v1019 = vadd.f32 %v969, %v1008
  %v1020 = vadd.f32 %v970, %v1011
  %v1021 = vadd.f32 %v971, %v1014
  %v1022 = vadd.f32 %v972, %v1017
  %v1023 = vld [vmem:[%s5] sm:$0x1]
  %v1025 = vperm.slane %v1023, 0
  %v1027 = vadd.f32 %v1019, %v1025
  %v1028 = vadd.f32 %v1020, %v1025
  %v1029 = vadd.f32 %v1021, %v1025
  %v1030 = vadd.f32 %v1022, %v1025
  %vm1031 = vcmask 64512
  %1032 = vst.msk [vmem:[%s6] sm:$0xff] %vm1031, %v1027
  %1033 = vst.msk [vmem:[%s6 + $0x8] sm:$0xff] %vm1031, %v1028
  %1034 = vst.msk [vmem:[%s6 + $0x10] sm:$0xff] %vm1031, %v1029
  %1035 = vst.msk [vmem:[%s6 + $0x18] sm:$0xff] %vm1031, %v1030
  // Predicated region
  $region26: #{rgcn_forward.1} parent=0 // pred_check
    _
  $region27: #{rgcn_forward.1} parent=0 // pred_check_branch
    %1037 = sbr.rel (0) target = $region29
  $region28: #{rgcn_forward.1} parent=0 // pred_region
    _
  $region29: #{rgcn_forward.1} parent=0 // pred_fallthru
    _
  // Predicated region
  $region30: #{rgcn_forward.1} parent=0 // pred_check
    _
  $region31: #{rgcn_forward.1} parent=0 // pred_check_branch
    %1039 = sbr.rel (0) target = $region33
  $region32: #{rgcn_forward.1} parent=0 // pred_region
    _
  $region33: #{rgcn_forward.1} parent=0 // pred_fallthru
    _

</llo_original>
